<compile_context>
chip_gen: v6e
topology: v6e:2x2x1
jax: 0.10.0
libtpu: 0.0.40
codegen_flags: <defaults>
</compile_context>

<pallas_src>
import jax
import jax.numpy as jnp
from jax import lax
from jax.experimental import pallas as pl
from jax.experimental.pallas import tpu as pltpu


# ----------------------------------------------------------------------------
# helpers
# ----------------------------------------------------------------------------
def _round_up(x, m):
    return (x + m - 1) // m * m


def _vmem_limit_bytes():
    """~85% of physical VMEM, capped at 100 MiB.

    v7x (64 MiB/TC) -> ~54 MiB; v5e/v6e (128 MiB) -> 100 MiB.  Explicit
    because v5e's default scoped limit is only 16 MiB.
    """
    cap = None
    try:
        cap = getattr(pltpu.get_tpu_info(), "vmem_capacity_bytes", None)
    except Exception:
        cap = None
    if not cap:
        cap = 64 * 1024 * 1024          # conservative fallback (v7x per-TC)
    return int(min(cap * 0.85, 100 * 1024 * 1024))


def _pick_m_tiling(M):
    """Return (tm, m_pad): rows per grid step and padded total rows.

    Small problems: single grid step (the grid is a serial loop on v5e/v6e;
    splitting tiny M only adds ~0.35us per extra step).  Large problems: big
    tiles amortize per-step overhead, and an even step count keeps both v7x
    TensorCores busy on the "parallel" axis.
    """
    m8 = _round_up(max(M, 8), 8)
    if m8 <= 1024:
        return m8, m8
    tm = 1024 if m8 >= 4096 else 512
    m_pad = _round_up(m8, 2 * tm)       # even number of grid steps
    return tm, m_pad


# ----------------------------------------------------------------------------
# Pallas kernel:
#   DMA row-gather(emb, ids) * mask -> relu(x@W1+b1) -> relu(.@W2+b2) -> .@W3+b3
# ----------------------------------------------------------------------------
def picker_kernel(ids_ref, mask_ref, emb_hbm, w1_ref, b1_ref, w2_ref, b2_ref,
                  w3_ref, b3_ref, o_ref, x_buf, gather_sem):
    tm = x_buf.shape[0]
    base = pl.program_id(0) * tm

    # --- Encoder stand-in: embedding row-gather via per-row DMA ------------
    # ids live in SMEM (scalar prefetch); the table stays in HBM (pl.ANY), so
    # there is no VMEM-residency requirement and no one-hot matmul.
    @pl.loop(0, tm)
    def _issue(r):
        rid = ids_ref[base + r]
        pltpu.make_async_copy(emb_hbm.at[rid], x_buf.at[r], gather_sem).start()

    @pl.loop(0, tm)
    def _wait(r):
        rid = ids_ref[base + r]
        pltpu.make_async_copy(emb_hbm.at[rid], x_buf.at[r], gather_sem).wait()

    # Mask the (tm, Dp) activation per row (f32; exact for 0/1 or float masks,
    # far cheaper than masking a (tm, Vp) one-hot).
    x = x_buf[...] * mask_ref[...]

    # --- FeedForward + classifier head (bf16 operands, f32 accumulation) ---
    h1 = jnp.dot(x.astype(jnp.bfloat16), w1_ref[...],
                 preferred_element_type=jnp.float32)
    h1 = jnp.maximum(h1 + b1_ref[...], 0.0)
    h2 = jnp.dot(h1.astype(jnp.bfloat16), w2_ref[...],
                 preferred_element_type=jnp.float32)
    h2 = jnp.maximum(h2 + b2_ref[...], 0.0)
    out = jnp.dot(h2.astype(jnp.bfloat16), w3_ref[...],
                  preferred_element_type=jnp.float32) + b3_ref[...]
    # bf16 store halves the padded-OUT writeback; lane-dense (no vst.msk).
    o_ref[...] = out.astype(o_ref.dtype)


# ----------------------------------------------------------------------------
# Parameter prep: pad feature dims to lane multiples; weights bf16, biases f32.
# Embedding stays f32 in HBM (word-aligned single-row gather DMAs).
# ----------------------------------------------------------------------------
def prepare_picker_params(params):
    emb = params["embedding"]
    w1, b1 = params["w1"], params["b1"]
    w2, b2 = params["w2"], params["b2"]
    w3, b3 = params["w3"], params["b3"]

    V, D = emb.shape
    H1, H2, OUT = w1.shape[1], w2.shape[1], w3.shape[1]
    Dp = _round_up(D, 128)
    H1p = _round_up(H1, 128)
    H2p = _round_up(H2, 128)
    OUTp = _round_up(OUT, 128)

    def pad2(a, rows, cols):
        return jnp.pad(a, ((0, rows - a.shape[0]), (0, cols - a.shape[1])))

    return dict(
        emb=pad2(emb, V, Dp).astype(jnp.float32),               # HBM gather src
        w1=pad2(w1, Dp, H1p).astype(jnp.bfloat16), b1=pad2(b1, 1, H1p),
        w2=pad2(w2, H1p, H2p).astype(jnp.bfloat16), b2=pad2(b2, 1, H2p),
        w3=pad2(w3, H2p, OUTp).astype(jnp.bfloat16), b3=pad2(b3, 1, OUTp),
        out_dim=OUT, vocab=V,
    )


# ----------------------------------------------------------------------------
# Picker forward (thin glue, hot path entirely inside ONE Pallas kernel)
# ----------------------------------------------------------------------------
def picker_forward(prepped, input_ids, src_mask):
    B, S = input_ids.shape
    M = B * S
    tm, m_pad = _pick_m_tiling(M)

    ids = input_ids.reshape(M).astype(jnp.int32)
    # Clamp so padded / out-of-range ids can never drive an OOB DMA.
    # TODO(synk): PyTorch's nn.Embedding would raise on out-of-range ids.
    ids = jnp.clip(ids, 0, prepped["vocab"] - 1)
    ids = jnp.pad(ids, (0, m_pad - M))                 # padded rows: id 0
    mask = src_mask.reshape(M, 1).astype(jnp.float32)
    mask = jnp.pad(mask, ((0, m_pad - M), (0, 0)))     # padded rows: mask 0

    emb = prepped["emb"]
    w1, b1 = prepped["w1"], prepped["b1"]
    w2, b2 = prepped["w2"], prepped["b2"]
    w3, b3 = prepped["w3"], prepped["b3"]
    Dp = emb.shape[1]
    OUTp = b3.shape[1]

    def _const_spec(shape):
        # Constant-index operands: fetched once, never re-DMA'd -> single
        # buffer halves their VMEM footprint.
        try:
            return pl.BlockSpec(shape, lambda i, ids_sm: (0, 0),
                                pipeline_mode=pl.Buffered(1))
        except TypeError:   # BlockSpec without pipeline_mode support
            return pl.BlockSpec(shape, lambda i, ids_sm: (0, 0))

    grid = (m_pad // tm,)
    out = pl.pallas_call(
        picker_kernel,
        out_shape=jax.ShapeDtypeStruct((m_pad, OUTp), jnp.bfloat16),
        grid_spec=pltpu.PrefetchScalarGridSpec(
            num_scalar_prefetch=1,                              # ids -> SMEM
            grid=grid,
            in_specs=[
                pl.BlockSpec((tm, 1), lambda i, ids_sm: (i, 0)),  # src_mask
                pl.BlockSpec(memory_space=pl.ANY),                # emb (HBM)
                _const_spec(w1.shape), _const_spec(b1.shape),
                _const_spec(w2.shape), _const_spec(b2.shape),
                _const_spec(w3.shape), _const_spec(b3.shape),
            ],
            out_specs=pl.BlockSpec((tm, OUTp), lambda i, ids_sm: (i, 0)),
            scratch_shapes=[
                pltpu.VMEM((tm, Dp), jnp.float32),   # gathered embedding rows
                pltpu.SemaphoreType.DMA,             # shared gather semaphore
            ],
        ),
        compiler_params=pltpu.CompilerParams(
            dimension_semantics=("parallel",),
            vmem_limit_bytes=_vmem_limit_bytes(),
        ),
    )(ids, mask, emb, w1, b1, w2, b2, w3, b3)

    out_dim = prepped["out_dim"]
    return out[:M, :out_dim].astype(jnp.float32).reshape(B, S, out_dim)


def make_params(key, vocab, input_dim, hidden_dim1, hidden_dim2, output_dim):
    ks = jax.random.split(key, 4)

    def lin(k, fan_in, fan_out):
        # PyTorch nn.Linear default init: U(-1/sqrt(fan_in), 1/sqrt(fan_in))
        bound = 1.0 / jnp.sqrt(fan_in)
        kw, kb = jax.random.split(k)
        w = jax.random.uniform(kw, (fan_in, fan_out), jnp.float32, -bound, bound)
        b = jax.random.uniform(kb, (1, fan_out), jnp.float32, -bound, bound)
        return w, b

    w1, b1 = lin(ks[0], input_dim, hidden_dim1)
    w2, b2 = lin(ks[1], hidden_dim1, hidden_dim2)
    w3, b3 = lin(ks[2], hidden_dim2, output_dim)
    embedding = jax.random.normal(ks[3], (vocab, input_dim), jnp.float32) * 0.02
    return dict(embedding=embedding, w1=w1, b1=b1, w2=w2, b2=b2, w3=w3, b3=b3)


if __name__ == "__main__":
    # Small shapes: batch=2, seq=8, encoder hidden (input_dim)=32,
    # FeedForward hidden_dim1=64, hidden_dim2=32, Linear output_dim_hard=2.
    B, S = 2, 8
    VOCAB = 64
    INPUT_DIM, H1, H2, OUT_DIM = 32, 64, 32, 2

    key = jax.random.PRNGKey(0)
    k_ids, k_params = jax.random.split(key)

    params = make_params(k_params, VOCAB, INPUT_DIM, H1, H2, OUT_DIM)
    prepped = prepare_picker_params(params)

    input_ids = jax.random.randint(k_ids, (B, S), 0, VOCAB, dtype=jnp.int32)
    src_mask = jnp.ones((B, S), dtype=jnp.int32)

    out = jax.block_until_ready(picker_forward(prepped, input_ids, src_mask))

    # Reference in plain JAX with matching mixed precision (f32 gather + mask,
    # bf16 matmul operands, f32 accumulation, bf16 output store).
    maskf = src_mask[..., None].astype(jnp.float32)
    x = (params["embedding"][input_ids] * maskf).reshape(B * S, INPUT_DIM)
    w1r, b1r = prepped["w1"][:INPUT_DIM, :H1], params["b1"][0]
    w2r, b2r = prepped["w2"][:H1, :H2], params["b2"][0]
    w3r, b3r = prepped["w3"][:H2, :OUT_DIM], params["b3"][0]
    h1 = jnp.maximum(jnp.dot(x.astype(jnp.bfloat16), w1r,
                             preferred_element_type=jnp.float32) + b1r, 0.0)
    h2 = jnp.maximum(jnp.dot(h1.astype(jnp.bfloat16), w2r,
                             preferred_element_type=jnp.float32) + b2r, 0.0)
    ref = (jnp.dot(h2.astype(jnp.bfloat16), w3r,
                   preferred_element_type=jnp.float32) + b3r)
    ref = ref.astype(jnp.bfloat16).astype(jnp.float32).reshape(B, S, OUT_DIM)

    assert out.shape == (B, S, OUT_DIM)
    assert jnp.allclose(out, ref, atol=1e-2, rtol=1e-2), float(
        jnp.max(jnp.abs(out - ref)))

    print("KERNEL_OK")
</pallas_src>

<mosaic_0001>
module attributes {stable_mosaic.version = 11 : i64} {
  func.func @picker_kernel(%arg0: i32, %arg1: memref<16xi32, #tpu.memory_space<smem>>, %arg2: memref<16x1xf32, #tpu.memory_space<vmem>>, %arg3: memref<64x128xf32, #tpu.memory_space<any>>, %arg4: memref<128x128xbf16, #tpu.memory_space<vmem>>, %arg5: memref<1x128xf32, #tpu.memory_space<vmem>>, %arg6: memref<128x128xbf16, #tpu.memory_space<vmem>>, %arg7: memref<1x128xf32, #tpu.memory_space<vmem>>, %arg8: memref<128x128xbf16, #tpu.memory_space<vmem>>, %arg9: memref<1x128xf32, #tpu.memory_space<vmem>>, %arg10: memref<16x128xbf16, #tpu.memory_space<vmem>>, %arg11: memref<16x128xf32, #tpu.memory_space<vmem>>, %arg12: memref<!tpu.dma_semaphore, #tpu.memory_space<semaphore_mem>>) attributes {dimension_semantics = [#tpu.dimension_semantics<parallel>], iteration_bounds = array<i64: 1>, scalar_prefetch = 1 : i64, scratch_operands = 2 : i64, tpu.core_type = #tpu.core_type<tc>, window_params = [{transform_indices = @transform_0, window_bounds = array<i64: 16, 1>}, {}, {pipeline_mode = #tpu.pipeline_mode<synchronous>, transform_indices = @transform_2, window_bounds = array<i64: 128, 128>}, {pipeline_mode = #tpu.pipeline_mode<synchronous>, transform_indices = @transform_3, window_bounds = array<i64: 1, 128>}, {pipeline_mode = #tpu.pipeline_mode<synchronous>, transform_indices = @transform_4, window_bounds = array<i64: 128, 128>}, {pipeline_mode = #tpu.pipeline_mode<synchronous>, transform_indices = @transform_5, window_bounds = array<i64: 1, 128>}, {pipeline_mode = #tpu.pipeline_mode<synchronous>, transform_indices = @transform_6, window_bounds = array<i64: 128, 128>}, {pipeline_mode = #tpu.pipeline_mode<synchronous>, transform_indices = @transform_7, window_bounds = array<i64: 1, 128>}, {transform_indices = @transform_8, window_bounds = array<i64: 16, 128>}]} {
    %c16_i32 = arith.constant 16 : i32
    %0 = arith.muli %arg0, %c16_i32 : i32
    %c0_i32 = arith.constant 0 : i32
    %c16_i32_0 = arith.constant 16 : i32
    %1 = arith.addi %c0_i32, %c16_i32_0 : i32
    %c1_i32 = arith.constant 1 : i32
    scf.for %arg13 = %c0_i32 to %1 step %c1_i32  : i32 {
      %c1_i32_27 = arith.constant 1 : i32
      %31 = arith.muli %arg13, %c1_i32_27 : i32
      %c0_i32_28 = arith.constant 0 : i32
      %32 = arith.addi %c0_i32_28, %31 : i32
      %33 = arith.addi %0, %32 : i32
      %34 = arith.index_cast %33 : i32 to index
      %35 = memref.load %arg1[%34] : memref<16xi32, #tpu.memory_space<smem>>
      %c0_i32_29 = arith.constant 0 : i32
      %36 = tpu.memref_slice %arg3[%35, %c0_i32_29] : memref<64x128xf32, #tpu.memory_space<any>> -> memref<1x128xf32, #tpu.memory_space<any>>
      %37 = tpu.memref_squeeze %36 : memref<1x128xf32, #tpu.memory_space<any>> -> memref<128xf32, #tpu.memory_space<any>>
      %c0_i32_30 = arith.constant 0 : i32
      %38 = tpu.memref_slice %arg11[%32, %c0_i32_30] : memref<16x128xf32, #tpu.memory_space<vmem>> -> memref<1x128xf32, #tpu.memory_space<vmem>>
      %39 = tpu.memref_squeeze %38 : memref<1x128xf32, #tpu.memory_space<vmem>> -> memref<128xf32, #tpu.memory_space<vmem>>
      tpu.enqueue_dma source(%37 : memref<128xf32, #tpu.memory_space<any>>) target(%39 : memref<128xf32, #tpu.memory_space<vmem>>) target_semaphore(%arg12 : memref<!tpu.dma_semaphore, #tpu.memory_space<semaphore_mem>>)
    }
    %c16_i32_1 = arith.constant 16 : i32
    %c0_i32_2 = arith.constant 0 : i32
    %c16_i32_3 = arith.constant 16 : i32
    %2 = arith.addi %c0_i32_2, %c16_i32_3 : i32
    %c1_i32_4 = arith.constant 1 : i32
    scf.for %arg13 = %c0_i32_2 to %2 step %c1_i32_4  : i32 {
      %c1_i32_27 = arith.constant 1 : i32
      %31 = arith.muli %arg13, %c1_i32_27 : i32
      %c0_i32_28 = arith.constant 0 : i32
      %32 = arith.addi %c0_i32_28, %31 : i32
      %33 = arith.addi %0, %32 : i32
      %34 = arith.index_cast %33 : i32 to index
      %35 = memref.load %arg1[%34] : memref<16xi32, #tpu.memory_space<smem>>
      %c0_i32_29 = arith.constant 0 : i32
      %36 = tpu.memref_slice %arg3[%35, %c0_i32_29] : memref<64x128xf32, #tpu.memory_space<any>> -> memref<1x128xf32, #tpu.memory_space<any>>
      %37 = tpu.memref_squeeze %36 : memref<1x128xf32, #tpu.memory_space<any>> -> memref<128xf32, #tpu.memory_space<any>>
      %c0_i32_30 = arith.constant 0 : i32
      %38 = tpu.memref_slice %arg11[%32, %c0_i32_30] : memref<16x128xf32, #tpu.memory_space<vmem>> -> memref<1x128xf32, #tpu.memory_space<vmem>>
      %39 = tpu.memref_squeeze %38 : memref<1x128xf32, #tpu.memory_space<vmem>> -> memref<128xf32, #tpu.memory_space<vmem>>
      tpu.wait_dma2 semaphore(%arg12 : memref<!tpu.dma_semaphore, #tpu.memory_space<semaphore_mem>>) src(%37 : memref<128xf32, #tpu.memory_space<any>>) dst(%39 : memref<128xf32, #tpu.memory_space<vmem>>)
    }
    %c16_i32_5 = arith.constant 16 : i32
    %c0 = arith.constant 0 : index
    %c0_6 = arith.constant 0 : index
    %3 = vector.load %arg11[%c0, %c0_6] : memref<16x128xf32, #tpu.memory_space<vmem>>, vector<16x128xf32>
    %c0_7 = arith.constant 0 : index
    %c0_8 = arith.constant 0 : index
    %4 = vector.load %arg2[%c0_7, %c0_8] : memref<16x1xf32, #tpu.memory_space<vmem>>, vector<16x1xf32>
    %5 = vector.broadcast %4 : vector<16x1xf32> to vector<16x128xf32>
    %6 = arith.mulf %3, %5 : vector<16x128xf32>
    %7 = arith.truncf %6 : vector<16x128xf32> to vector<16x128xbf16>
    %c0_9 = arith.constant 0 : index
    %c0_10 = arith.constant 0 : index
    %8 = vector.load %arg4[%c0_9, %c0_10] : memref<128x128xbf16, #tpu.memory_space<vmem>>, vector<128x128xbf16>
    %cst = arith.constant dense<0.000000e+00> : vector<16x128xf32>
    %9 = tpu.matmul %7, %8, %cst {dimension_numbers = #tpu.dot_dimension_numbers<[1], [0], [0], [1], [0, 0, 1, 1], [], []>} : vector<16x128xbf16>, vector<128x128xbf16>, vector<16x128xf32> -> vector<16x128xf32>
    %c0_11 = arith.constant 0 : index
    %c0_12 = arith.constant 0 : index
    %10 = vector.load %arg5[%c0_11, %c0_12] : memref<1x128xf32, #tpu.memory_space<vmem>>, vector<1x128xf32>
    %11 = vector.broadcast %10 : vector<1x128xf32> to vector<16x128xf32>
    %12 = arith.addf %9, %11 : vector<16x128xf32>
    %cst_13 = arith.constant 0.000000e+00 : f32
    %13 = vector.broadcast %cst_13 : f32 to vector<16x128xf32>
    %14 = arith.maximumf %12, %13 : vector<16x128xf32>
    %15 = arith.truncf %14 : vector<16x128xf32> to vector<16x128xbf16>
    %c0_14 = arith.constant 0 : index
    %c0_15 = arith.constant 0 : index
    %16 = vector.load %arg6[%c0_14, %c0_15] : memref<128x128xbf16, #tpu.memory_space<vmem>>, vector<128x128xbf16>
    %cst_16 = arith.constant dense<0.000000e+00> : vector<16x128xf32>
    %17 = tpu.matmul %15, %16, %cst_16 {dimension_numbers = #tpu.dot_dimension_numbers<[1], [0], [0], [1], [0, 0, 1, 1], [], []>} : vector<16x128xbf16>, vector<128x128xbf16>, vector<16x128xf32> -> vector<16x128xf32>
    %c0_17 = arith.constant 0 : index
    %c0_18 = arith.constant 0 : index
    %18 = vector.load %arg7[%c0_17, %c0_18] : memref<1x128xf32, #tpu.memory_space<vmem>>, vector<1x128xf32>
    %19 = vector.broadcast %18 : vector<1x128xf32> to vector<16x128xf32>
    %20 = arith.addf %17, %19 : vector<16x128xf32>
    %cst_19 = arith.constant 0.000000e+00 : f32
    %21 = vector.broadcast %cst_19 : f32 to vector<16x128xf32>
    %22 = arith.maximumf %20, %21 : vector<16x128xf32>
    %23 = arith.truncf %22 : vector<16x128xf32> to vector<16x128xbf16>
    %c0_20 = arith.constant 0 : index
    %c0_21 = arith.constant 0 : index
    %24 = vector.load %arg8[%c0_20, %c0_21] : memref<128x128xbf16, #tpu.memory_space<vmem>>, vector<128x128xbf16>
    %cst_22 = arith.constant dense<0.000000e+00> : vector<16x128xf32>
    %25 = tpu.matmul %23, %24, %cst_22 {dimension_numbers = #tpu.dot_dimension_numbers<[1], [0], [0], [1], [0, 0, 1, 1], [], []>} : vector<16x128xbf16>, vector<128x128xbf16>, vector<16x128xf32> -> vector<16x128xf32>
    %c0_23 = arith.constant 0 : index
    %c0_24 = arith.constant 0 : index
    %26 = vector.load %arg9[%c0_23, %c0_24] : memref<1x128xf32, #tpu.memory_space<vmem>>, vector<1x128xf32>
    %27 = vector.broadcast %26 : vector<1x128xf32> to vector<16x128xf32>
    %28 = arith.addf %25, %27 : vector<16x128xf32>
    %29 = arith.truncf %28 : vector<16x128xf32> to vector<16x128xbf16>
    %c0_25 = arith.constant 0 : index
    %c0_26 = arith.constant 0 : index
    %30 = vector.load %arg10[%c0_25, %c0_26] : memref<16x128xbf16, #tpu.memory_space<vmem>>, vector<16x128xbf16>
    tpu.vector_store %arg10[%c0_25, %c0_26], %29 {strides = array<i32>} : memref<16x128xbf16, #tpu.memory_space<vmem>>, vector<16x128xbf16>,
    return
  }
  func.func @transform_0(%arg0: i32, %arg1: memref<16xi32, #tpu.memory_space<smem>>) -> (i32, i32) {
    %c0_i32 = arith.constant 0 : i32
    %c0_i32_0 = arith.constant 0 : i32
    return %arg0, %c0_i32 : i32, i32
  }
  func.func @transform_2(%arg0: i32, %arg1: memref<16xi32, #tpu.memory_space<smem>>) -> (i32, i32) {
    %c0_i32 = arith.constant 0 : i32
    %c0_i32_0 = arith.constant 0 : i32
    %c0_i32_1 = arith.constant 0 : i32
    return %c0_i32, %c0_i32_0 : i32, i32
  }
  func.func @transform_3(%arg0: i32, %arg1: memref<16xi32, #tpu.memory_space<smem>>) -> (i32, i32) {
    %c0_i32 = arith.constant 0 : i32
    %c0_i32_0 = arith.constant 0 : i32
    %c0_i32_1 = arith.constant 0 : i32
    return %c0_i32, %c0_i32_0 : i32, i32
  }
  func.func @transform_4(%arg0: i32, %arg1: memref<16xi32, #tpu.memory_space<smem>>) -> (i32, i32) {
    %c0_i32 = arith.constant 0 : i32
    %c0_i32_0 = arith.constant 0 : i32
    %c0_i32_1 = arith.constant 0 : i32
    return %c0_i32, %c0_i32_0 : i32, i32
  }
  func.func @transform_5(%arg0: i32, %arg1: memref<16xi32, #tpu.memory_space<smem>>) -> (i32, i32) {
    %c0_i32 = arith.constant 0 : i32
    %c0_i32_0 = arith.constant 0 : i32
    %c0_i32_1 = arith.constant 0 : i32
    return %c0_i32, %c0_i32_0 : i32, i32
  }
  func.func @transform_6(%arg0: i32, %arg1: memref<16xi32, #tpu.memory_space<smem>>) -> (i32, i32) {
    %c0_i32 = arith.constant 0 : i32
    %c0_i32_0 = arith.constant 0 : i32
    %c0_i32_1 = arith.constant 0 : i32
    return %c0_i32, %c0_i32_0 : i32, i32
  }
  func.func @transform_7(%arg0: i32, %arg1: memref<16xi32, #tpu.memory_space<smem>>) -> (i32, i32) {
    %c0_i32 = arith.constant 0 : i32
    %c0_i32_0 = arith.constant 0 : i32
    %c0_i32_1 = arith.constant 0 : i32
    return %c0_i32, %c0_i32_0 : i32, i32
  }
  func.func @transform_8(%arg0: i32, %arg1: memref<16xi32, #tpu.memory_space<smem>>) -> (i32, i32) {
    %c0_i32 = arith.constant 0 : i32
    %c0_i32_0 = arith.constant 0 : i32
    return %arg0, %c0_i32 : i32, i32
  }
}

</mosaic_0001>

<llo_original>
// kernel: tpu_custom_call.1
$region0: #{tpu_custom_call.1}
  #allocation0 [shape = 'u32[]', space=smem, size = 0x4, offset = 0x4, fixed_abs, tag = 'smem constant byte address 0x4 - core index']
  #allocation1 [shape = 'u32[144,128]{1,0:T(1,128)}', space=vmem, size = 0x12000, scoped, tag = 'internal scratch']
  #allocation2 [shape = 'f32[16,128]{1,0:T(8,128)}', space=vmem, size = 0x2000, scoped, tag = 'scratch operand']
  #allocation3 [shape = 's32[1]{0}', space=sflag, size = 0x4, scoped, tag = 'scratch operand']
  #allocation4 [shape = 's32[1]{0}', space=sflag, size = 0x4, scoped, tag = 'scoped memory for tpu_custom_call.1']
  #allocation5 [shape = 'u8[512]{0}', space=smem, size = 0x200, scoped, tag = 'prefetched SMEM operand 0']
  #allocation13 [shape = 's32[]', space=sflag, size = 0x4, offset = 0, fixed_abs, tag = 'sflag constant byte address 0x0 - dummy sync flag']
  #allocation14 [shape = 's32[]', space=sflag, size = 0x4, offset = 0, fixed_abs, tag = 'sflag constant byte address 0x0 - dummy sync flag']
  #allocation15 [shape = 'u32[]', space=smem, size = 0x4, offset = 0x44, fixed_abs, tag = 'smem constant byte address 0x44 - assertion arg 0']
  #allocation16 [shape = 'u32[]', space=smem, size = 0x4, offset = 0x48, fixed_abs, tag = 'smem constant byte address 0x48 - assertion arg 1']
  %s0 = inlined_call_operand.vmem [shape: s32[16], index: 0, kind: input, shape index: {}]
  %s1 = inlined_call_operand.vmem [shape: f32[16,1], index: 1, kind: input, shape index: {}]
  %s2 = inlined_call_operand.hbm [shape: f32[64,128], index: 2, kind: input, shape index: {}]
  %s3 = inlined_call_operand.hbm [shape: bf16[128,128], index: 3, kind: input, shape index: {}]
  %s4 = inlined_call_operand.vmem [shape: f32[1,128], index: 4, kind: input, shape index: {}]
  %s5 = inlined_call_operand.hbm [shape: bf16[128,128], index: 5, kind: input, shape index: {}]
  %s6 = inlined_call_operand.vmem [shape: f32[1,128], index: 6, kind: input, shape index: {}]
  %s7 = inlined_call_operand.hbm [shape: bf16[128,128], index: 7, kind: input, shape index: {}]
  %s8 = inlined_call_operand.vmem [shape: f32[1,128], index: 8, kind: input, shape index: {}]
  %s9 = inlined_call_operand.hbm [shape: bf16[16,128], index: 9, kind: output, shape index: {}]
  %s10 = sld [smem:[#allocation0]]
  $region68: #{tpu_custom_call.1} parent=0
    _
  %s12 = ssub.s32 1, %s10
  %s13 = scalar_select 0, %s12, %s10
  %s14 = sshll.u32 %s0, 4
  %s15 = int_to_ptr.vmem [resolvable:$true] %s14
  %17 = dma.vmem_to_smem %s15, 16, [#allocation5], [#allocation4]
  %18 = dma.done [#allocation4], 16
  %19 = sfence
  $region1: #{tpu_custom_call.1} parent=0
    #allocation6 [shape = 'u8[32768]{0}', space=vmem, size = 0x8000, scoped, tag = 'input window, operand 3, single buffered']
    #allocation7 [shape = 's32[1]{0}', space=sflag, size = 0x4, scoped, tag = 'scoped memory for tpu_custom_call.1']
    #allocation8 [shape = 's32[1]{0}', space=sflag, size = 0x4, scoped, tag = 'scoped memory for tpu_custom_call.1']
    #allocation9 [shape = 'u8[32768]{0}', space=vmem, size = 0x8000, scoped, tag = 'input window, operand 5, single buffered']
    #allocation10 [shape = 's32[1]{0}', space=sflag, size = 0x4, scoped, tag = 'scoped memory for tpu_custom_call.1']
    #allocation11 [shape = 'u8[32768]{0}', space=vmem, size = 0x8000, scoped, tag = 'input window, operand 7, single buffered']
    #allocation12 [shape = 'u8[4096]{0}', space=vmem, size = 0x1000, scoped, tag = 'output window, operand 0, single buffered']
    %20 = vsyncpa [#allocation7], 0
    %21 = vsyncpa [#allocation10], 0
    %22 = vsyncpa [#allocation8], 0
    // Predicated region
    $region2: #{tpu_custom_call.1} parent=1 // pred_check
      _
    $region3: #{tpu_custom_call.1} parent=1 // pred_check_branch
      %24 = sbr.rel (0) target = $region5
    $region4: #{tpu_custom_call.1} parent=1 // pred_region
      _
    $region5: #{tpu_custom_call.1} parent=1 // pred_fallthru
      _
    // Predicated region
    $region6: #{tpu_custom_call.1} parent=1 // pred_check
      _
    $region7: #{tpu_custom_call.1} parent=1 // pred_check_branch
      %26 = sbr.rel (0) target = $region9
    $region8: #{tpu_custom_call.1} parent=1 // pred_region
      %s28 = ssub.s32 1024, 1024
      %29 = vsyncadd [#allocation7], %s28
      %s30 = sshll.u32 [#allocation6], 4
      %s31 = int_to_ptr.vmem [resolvable:$true] %s30
      %36 = dma.hbm_to_vmem [thread:$0]  %s3, 1024, %s31, [#allocation7], 64, 64, 4
    $region9: #{tpu_custom_call.1} parent=1 // pred_fallthru
      _
    // Predicated region
    $region10: #{tpu_custom_call.1} parent=1 // pred_check
      _
    $region11: #{tpu_custom_call.1} parent=1 // pred_check_branch
      %38 = sbr.rel (0) target = $region13
    $region12: #{tpu_custom_call.1} parent=1 // pred_region
      _
    $region13: #{tpu_custom_call.1} parent=1 // pred_fallthru
      _
    // Predicated region
    $region14: #{tpu_custom_call.1} parent=1 // pred_check
      _
    $region15: #{tpu_custom_call.1} parent=1 // pred_check_branch
      %40 = sbr.rel (0) target = $region17
    $region16: #{tpu_custom_call.1} parent=1 // pred_region
      %s42 = ssub.s32 1024, 1024
      %43 = vsyncadd [#allocation10], %s42
      %s44 = sshll.u32 [#allocation9], 4
      %s45 = int_to_ptr.vmem [resolvable:$true] %s44
      %50 = dma.hbm_to_vmem [thread:$0]  %s5, 1024, %s45, [#allocation10], 64, 64, 4
    $region17: #{tpu_custom_call.1} parent=1 // pred_fallthru
      _
    // Predicated region
    $region18: #{tpu_custom_call.1} parent=1 // pred_check
      _
    $region19: #{tpu_custom_call.1} parent=1 // pred_check_branch
      %52 = sbr.rel (0) target = $region21
    $region20: #{tpu_custom_call.1} parent=1 // pred_region
      _
    $region21: #{tpu_custom_call.1} parent=1 // pred_fallthru
      _
    // Predicated region
    $region22: #{tpu_custom_call.1} parent=1 // pred_check
      _
    $region23: #{tpu_custom_call.1} parent=1 // pred_check_branch
      %54 = sbr.rel (0) target = $region25
    $region24: #{tpu_custom_call.1} parent=1 // pred_region
      %s56 = ssub.s32 1024, 1024
      %57 = vsyncadd [#allocation10], %s56
      %s58 = sshll.u32 [#allocation11], 4
      %s59 = int_to_ptr.vmem [resolvable:$true] %s58
      %64 = dma.hbm_to_vmem [thread:$0]  %s7, 1024, %s59, [#allocation10], 64, 64, 4
    $region25: #{tpu_custom_call.1} parent=1 // pred_fallthru
      _
    // Predicated region
    $region26: #{tpu_custom_call.1} parent=1 // pred_check
      _
    $region27: #{tpu_custom_call.1} parent=1 // pred_check_branch
      %66 = sbr.rel (0) target = $region29
    $region28: #{tpu_custom_call.1} parent=1 // pred_region
      _
    $region29: #{tpu_custom_call.1} parent=1 // pred_fallthru
      _
    // Predicated region
    $region30: #{tpu_custom_call.1} parent=1 // pred_check
      _
    $region31: #{tpu_custom_call.1} parent=1 // pred_check_branch
      %68 = sbr.rel (0) target = $region33
    $region32: #{tpu_custom_call.1} parent=1 // pred_region
      %69 = dma.done [#allocation7], 1024
    $region33: #{tpu_custom_call.1} parent=1 // pred_fallthru
      _
    // Predicated region
    $region34: #{tpu_custom_call.1} parent=1 // pred_check
      _
    $region35: #{tpu_custom_call.1} parent=1 // pred_check_branch
      %71 = sbr.rel (0) target = $region37
    $region36: #{tpu_custom_call.1} parent=1 // pred_region
      %72 = dma.done [#allocation10], 1024
    $region37: #{tpu_custom_call.1} parent=1 // pred_fallthru
      _
    // Predicated region
    $region38: #{tpu_custom_call.1} parent=1 // pred_check
      _
    $region39: #{tpu_custom_call.1} parent=1 // pred_check_branch
      %74 = sbr.rel (0) target = $region41
    $region40: #{tpu_custom_call.1} parent=1 // pred_region
      %75 = dma.done [#allocation10], 1024
    $region41: #{tpu_custom_call.1} parent=1 // pred_fallthru
      _
    %s77 = smul.u32 0, 16
    loop: start=0, step=1, limit=16
    $region42: #{tpu_custom_call.1} parent=1 // loop_pre_header
      _
    $region43: #{tpu_custom_call.1} parent=1 // loop_header
      %s79 = sphi 0, %s83
      %p80 = scmp.ge.s32.totalorder %s79, 16
    $region44: #{tpu_custom_call.1} parent=1 // loop_header_branch
      %82 = sbr.rel (%p80) target = $region48
    $region45: #{tpu_custom_call.1} parent=1 // loop_body
      %s84 = sadd.s32 %s77, %s79
      %s85 = sld [smem:[#allocation5 + %s84]]
      %s86 = smul.addr %s85, 16
      %s87 = scalar_lea.hbm %s2, %s86
      %s88 = scalar_lea.vmem [#allocation2], %s79
      // Predicated region
      $region49: #{tpu_custom_call.1} parent=45 // pred_check
        _
      $region50: #{tpu_custom_call.1} parent=45 // pred_check_branch
        %90 = sbr.rel target = $region52
      $region51: #{tpu_custom_call.1} parent=45 // pred_region
        %91 = sst [smem:[#allocation15]] [#allocation14]
        %92 = sst [smem:[#allocation16]] [#allocation13]
      $region52: #{tpu_custom_call.1} parent=45 // pred_fallthru
        _
      %94 = shalt.err (0)
      %s96 = sshll.u32 %s88, 4
      %s97 = int_to_ptr.vmem [resolvable:$true] %s96
      %99 = dma.hbm_to_vmem [thread:$0]  %s87, 16, %s97, [#allocation3]
    $region46: #{tpu_custom_call.1} parent=1 // loop_footer
      %s83 = sadd.s32 1, %s79
    $region47: #{tpu_custom_call.1} parent=1 // loop_footer_branch
      %78 = sbr.rel target = $region43
    $region48: #{tpu_custom_call.1} parent=1 // loop_exit
      _
    loop: start=0, step=1, limit=16
    $region53: #{tpu_custom_call.1} parent=1 // loop_pre_header
      _
    $region54: #{tpu_custom_call.1} parent=1 // loop_header
      %s101 = sphi 0, %s105
      %p102 = scmp.ge.s32.totalorder %s101, 16
    $region55: #{tpu_custom_call.1} parent=1 // loop_header_branch
      %104 = sbr.rel (%p102) target = $region59
    $region56: #{tpu_custom_call.1} parent=1 // loop_body
      %s106 = sadd.s32 %s77, %s101
      %s107 = sld [smem:[#allocation5 + %s106]]
      %109 = dma.done [#allocation3], 16
    $region57: #{tpu_custom_call.1} parent=1 // loop_footer
      %s105 = sadd.s32 1, %s101
    $region58: #{tpu_custom_call.1} parent=1 // loop_footer_branch
      %100 = sbr.rel target = $region54
    $region59: #{tpu_custom_call.1} parent=1 // loop_exit
      _
    %v110 = vld [vmem:[#allocation2] sm:$0xff]
    %v111 = vld [vmem:[#allocation2 + $0x8] sm:$0xff]
    %v112 = vld [vmem:[%s1] sm:$0xff]
    %v113 = vld [vmem:[%s1 + $0x8] sm:$0xff]
    %115 = vset.pattern.permute.xlu0 0
    %116 = vperm.xlu0 %115, %v112
    %v117 = vpop.permute.xlu0 %116
    %120 = vset.pattern.permute.xlu0 0
    %121 = vperm.xlu0 %120, %v113
    %v122 = vpop.permute.xlu0 %121
    %v124 = vmul.f32 %v110, %v117
    %v125 = vmul.f32 %v111, %v122
    %v126 = vpack.c.bf16 %v125, %v124
    %v127 = vld [vmem:[#allocation6] sm:$0xf]
    %v128 = vld [vmem:[#allocation6 + $0x4] sm:$0xf]
    %v129 = vld [vmem:[#allocation6 + $0x8] sm:$0xf]
    %v130 = vld [vmem:[#allocation6 + $0xc] sm:$0xf]
    %v131 = vld [vmem:[#allocation6 + $0x10] sm:$0xf]
    %v132 = vld [vmem:[#allocation6 + $0x14] sm:$0xf]
    %v133 = vld [vmem:[#allocation6 + $0x18] sm:$0xf]
    %v134 = vld [vmem:[#allocation6 + $0x1c] sm:$0xf]
    %v135 = vld [vmem:[#allocation6 + $0x20] sm:$0xf]
    %v136 = vld [vmem:[#allocation6 + $0x24] sm:$0xf]
    %v137 = vld [vmem:[#allocation6 + $0x28] sm:$0xf]
    %v138 = vld [vmem:[#allocation6 + $0x2c] sm:$0xf]
    %v139 = vld [vmem:[#allocation6 + $0x30] sm:$0xf]
    %v140 = vld [vmem:[#allocation6 + $0x34] sm:$0xf]
    %v141 = vld [vmem:[#allocation6 + $0x38] sm:$0xf]
    %v142 = vld [vmem:[#allocation6 + $0x3c] sm:$0xf]
    %v143 = vld [vmem:[%s4] sm:$0x1]
    %v145 = vlaneseq
    %v146 = vshrl.u32 %v145, 7
    %v147 = vsub.s32 0, %v146
    %v148 = vrot.slane %v143, %v147
    %v166 = vunpack.c.l.b16 %v127
    %v167 = vunpack.c.l.b16 %v128
    %v168 = vunpack.c.l.b16 %v129
    %v169 = vunpack.c.l.b16 %v130
    %v170 = vunpack.c.l.b16 %v131
    %v171 = vunpack.c.l.b16 %v132
    %v172 = vunpack.c.l.b16 %v133
    %v173 = vunpack.c.l.b16 %v134
    %v174 = vunpack.c.l.b16 %v135
    %v175 = vunpack.c.l.b16 %v136
    %v176 = vunpack.c.l.b16 %v137
    %v177 = vunpack.c.l.b16 %v138
    %v178 = vunpack.c.l.b16 %v139
    %v179 = vunpack.c.l.b16 %v140
    %v180 = vunpack.c.l.b16 %v141
    %v181 = vunpack.c.l.b16 %v142
    %v182 = vpack.c.b16 %v167, %v166
    %v183 = vpack.c.b16 %v169, %v168
    %v184 = vpack.c.b16 %v171, %v170
    %v185 = vpack.c.b16 %v173, %v172
    %v186 = vpack.c.b16 %v175, %v174
    %v187 = vpack.c.b16 %v177, %v176
    %v188 = vpack.c.b16 %v179, %v178
    %v189 = vpack.c.b16 %v181, %v180
    %198 = vmatprep.subr.bf16.mxu0 0
    %199 = vmatpush1.bf16.msra.mxu0 %v189
    %200 = vmatprep.subr.bf16.mxu0 0
    %201 = vmatpush1.bf16.msra.mxu0 %v188
    %202 = vmatprep.subr.bf16.mxu0 0
    %203 = vmatpush1.bf16.msra.mxu0 %v187
    %204 = vmatprep.subr.bf16.mxu0 0
    %205 = vmatpush1.bf16.msra.mxu0 %v186
    %206 = vmatprep.subr.bf16.mxu0 0
    %207 = vmatpush1.bf16.msra.mxu0 %v185
    %208 = vmatprep.subr.bf16.mxu0 0
    %209 = vmatpush1.bf16.msra.mxu0 %v184
    %210 = vmatprep.subr.bf16.mxu0 0
    %211 = vmatpush1.bf16.msra.mxu0 %v183
    %212 = vmatprep.subr.bf16.mxu0 0
    %213 = vmatpush1.bf16.msra.mxu0 %v182
    %214 = vmatprep.subr.bf16.mxu0 0
    %215 = vmatpush2.bf16.msra.mxu0 0
    %216 = vmatprep.subr.bf16.mxu0 0
    %217 = vmatpush2.bf16.msra.mxu0 0
    %218 = vmatprep.subr.bf16.mxu0 0
    %219 = vmatpush2.bf16.msra.mxu0 0
    %220 = vmatprep.subr.bf16.mxu0 0
    %221 = vmatpush2.bf16.msra.mxu0 0
    %222 = vmatprep.subr.bf16.mxu0 0
    %223 = vmatpush2.bf16.msra.mxu0 0
    %224 = vmatprep.subr.bf16.mxu0 0
    %225 = vmatpush2.bf16.msra.mxu0 0
    %226 = vmatprep.subr.bf16.mxu0 0
    %227 = vmatpush2.bf16.msra.mxu0 0
    %228 = vmatprep.subr.bf16.mxu0 0
    %229 = vmatpush2.bf16.msra.mxu0 0
    %230 = vmatprep.mubr.bf16.mxu0 0
    %231 = vmatmul.mubr.bf16.gmra.mxu0 %v126
    %v232 = vpop.f32.mrf.mxu0
    %v233 = vadd.f32 %v148, %v232
    %v234 = vpop.f32.mrf.mxu0
    %v235 = vpop.f32.mrf.mxu0
    %v236 = vadd.f32 %v148, %v235
    %v237 = vpop.f32.mrf.mxu0
    %238 = vdwg.mxu0
    %v239 = vmax.f32 %v233, 0.0
    %v240 = vmax.f32 %v236, 0.0
    %v241 = vpack.c.bf16 %v240, %v239
    %v242 = vld [vmem:[#allocation9] sm:$0xf]
    %v243 = vld [vmem:[#allocation9 + $0x4] sm:$0xf]
    %v244 = vld [vmem:[#allocation9 + $0x8] sm:$0xf]
    %v245 = vld [vmem:[#allocation9 + $0xc] sm:$0xf]
    %v246 = vld [vmem:[#allocation9 + $0x10] sm:$0xf]
    %v247 = vld [vmem:[#allocation9 + $0x14] sm:$0xf]
    %v248 = vld [vmem:[#allocation9 + $0x18] sm:$0xf]
    %v249 = vld [vmem:[#allocation9 + $0x1c] sm:$0xf]
    %v250 = vld [vmem:[#allocation9 + $0x20] sm:$0xf]
    %v251 = vld [vmem:[#allocation9 + $0x24] sm:$0xf]
    %v252 = vld [vmem:[#allocation9 + $0x28] sm:$0xf]
    %v253 = vld [vmem:[#allocation9 + $0x2c] sm:$0xf]
    %v254 = vld [vmem:[#allocation9 + $0x30] sm:$0xf]
    %v255 = vld [vmem:[#allocation9 + $0x34] sm:$0xf]
    %v256 = vld [vmem:[#allocation9 + $0x38] sm:$0xf]
    %v257 = vld [vmem:[#allocation9 + $0x3c] sm:$0xf]
    %v258 = vld [vmem:[%s6] sm:$0x1]
    %v260 = vlaneseq
    %v261 = vshrl.u32 %v260, 7
    %v262 = vsub.s32 0, %v261
    %v263 = vrot.slane %v258, %v262
    %v281 = vunpack.c.l.b16 %v242
    %v282 = vunpack.c.l.b16 %v243
    %v283 = vunpack.c.l.b16 %v244
    %v284 = vunpack.c.l.b16 %v245
    %v285 = vunpack.c.l.b16 %v246
    %v286 = vunpack.c.l.b16 %v247
    %v287 = vunpack.c.l.b16 %v248
    %v288 = vunpack.c.l.b16 %v249
    %v289 = vunpack.c.l.b16 %v250
    %v290 = vunpack.c.l.b16 %v251
    %v291 = vunpack.c.l.b16 %v252
    %v292 = vunpack.c.l.b16 %v253
    %v293 = vunpack.c.l.b16 %v254
    %v294 = vunpack.c.l.b16 %v255
    %v295 = vunpack.c.l.b16 %v256
    %v296 = vunpack.c.l.b16 %v257
    %v297 = vpack.c.b16 %v282, %v281
    %v298 = vpack.c.b16 %v284, %v283
    %v299 = vpack.c.b16 %v286, %v285
    %v300 = vpack.c.b16 %v288, %v287
    %v301 = vpack.c.b16 %v290, %v289
    %v302 = vpack.c.b16 %v292, %v291
    %v303 = vpack.c.b16 %v294, %v293
    %v304 = vpack.c.b16 %v296, %v295
    %313 = vmatprep.subr.bf16.mxu0 0
    %314 = vmatpush1.bf16.msra.mxu0 %v304
    %315 = vmatprep.subr.bf16.mxu0 0
    %316 = vmatpush1.bf16.msra.mxu0 %v303
    %317 = vmatprep.subr.bf16.mxu0 0
    %318 = vmatpush1.bf16.msra.mxu0 %v302
    %319 = vmatprep.subr.bf16.mxu0 0
    %320 = vmatpush1.bf16.msra.mxu0 %v301
    %321 = vmatprep.subr.bf16.mxu0 0
    %322 = vmatpush1.bf16.msra.mxu0 %v300
    %323 = vmatprep.subr.bf16.mxu0 0
    %324 = vmatpush1.bf16.msra.mxu0 %v299
    %325 = vmatprep.subr.bf16.mxu0 0
    %326 = vmatpush1.bf16.msra.mxu0 %v298
    %327 = vmatprep.subr.bf16.mxu0 0
    %328 = vmatpush1.bf16.msra.mxu0 %v297
    %329 = vmatprep.subr.bf16.mxu0 0
    %330 = vmatpush2.bf16.msra.mxu0 0
    %331 = vmatprep.subr.bf16.mxu0 0
    %332 = vmatpush2.bf16.msra.mxu0 0
    %333 = vmatprep.subr.bf16.mxu0 0
    %334 = vmatpush2.bf16.msra.mxu0 0
    %335 = vmatprep.subr.bf16.mxu0 0
    %336 = vmatpush2.bf16.msra.mxu0 0
    %337 = vmatprep.subr.bf16.mxu0 0
    %338 = vmatpush2.bf16.msra.mxu0 0
    %339 = vmatprep.subr.bf16.mxu0 0
    %340 = vmatpush2.bf16.msra.mxu0 0
    %341 = vmatprep.subr.bf16.mxu0 0
    %342 = vmatpush2.bf16.msra.mxu0 0
    %343 = vmatprep.subr.bf16.mxu0 0
    %344 = vmatpush2.bf16.msra.mxu0 0
    %345 = vmatprep.mubr.bf16.mxu0 0
    %346 = vmatmul.mubr.bf16.gmra.mxu0 %v241
    %v347 = vpop.f32.mrf.mxu0
    %v348 = vadd.f32 %v263, %v347
    %v349 = vpop.f32.mrf.mxu0
    %v350 = vpop.f32.mrf.mxu0
    %v351 = vadd.f32 %v263, %v350
    %v352 = vpop.f32.mrf.mxu0
    %353 = vdwg.mxu0
    %v354 = vmax.f32 %v348, 0.0
    %v355 = vmax.f32 %v351, 0.0
    %v356 = vpack.c.bf16 %v355, %v354
    %v357 = vld [vmem:[#allocation11] sm:$0xf]
    %v358 = vld [vmem:[#allocation11 + $0x4] sm:$0xf]
    %v359 = vld [vmem:[#allocation11 + $0x8] sm:$0xf]
    %v360 = vld [vmem:[#allocation11 + $0xc] sm:$0xf]
    %v361 = vld [vmem:[#allocation11 + $0x10] sm:$0xf]
    %v362 = vld [vmem:[#allocation11 + $0x14] sm:$0xf]
    %v363 = vld [vmem:[#allocation11 + $0x18] sm:$0xf]
    %v364 = vld [vmem:[#allocation11 + $0x1c] sm:$0xf]
    %v365 = vld [vmem:[#allocation11 + $0x20] sm:$0xf]
    %v366 = vld [vmem:[#allocation11 + $0x24] sm:$0xf]
    %v367 = vld [vmem:[#allocation11 + $0x28] sm:$0xf]
    %v368 = vld [vmem:[#allocation11 + $0x2c] sm:$0xf]
    %v369 = vld [vmem:[#allocation11 + $0x30] sm:$0xf]
    %v370 = vld [vmem:[#allocation11 + $0x34] sm:$0xf]
    %v371 = vld [vmem:[#allocation11 + $0x38] sm:$0xf]
    %v372 = vld [vmem:[#allocation11 + $0x3c] sm:$0xf]
    %v373 = vld [vmem:[%s8] sm:$0x1]
    %v375 = vlaneseq
    %v376 = vshrl.u32 %v375, 7
    %v377 = vsub.s32 0, %v376
    %v378 = vrot.slane %v373, %v377
    %v396 = vunpack.c.l.b16 %v357
    %v397 = vunpack.c.l.b16 %v358
    %v398 = vunpack.c.l.b16 %v359
    %v399 = vunpack.c.l.b16 %v360
    %v400 = vunpack.c.l.b16 %v361
    %v401 = vunpack.c.l.b16 %v362
    %v402 = vunpack.c.l.b16 %v363
    %v403 = vunpack.c.l.b16 %v364
    %v404 = vunpack.c.l.b16 %v365
    %v405 = vunpack.c.l.b16 %v366
    %v406 = vunpack.c.l.b16 %v367
    %v407 = vunpack.c.l.b16 %v368
    %v408 = vunpack.c.l.b16 %v369
    %v409 = vunpack.c.l.b16 %v370
    %v410 = vunpack.c.l.b16 %v371
    %v411 = vunpack.c.l.b16 %v372
    %v412 = vpack.c.b16 %v397, %v396
    %v413 = vpack.c.b16 %v399, %v398
    %v414 = vpack.c.b16 %v401, %v400
    %v415 = vpack.c.b16 %v403, %v402
    %v416 = vpack.c.b16 %v405, %v404
    %v417 = vpack.c.b16 %v407, %v406
    %v418 = vpack.c.b16 %v409, %v408
    %v419 = vpack.c.b16 %v411, %v410
    %428 = vmatprep.subr.bf16.mxu0 0
    %429 = vmatpush1.bf16.msra.mxu0 %v419
    %430 = vmatprep.subr.bf16.mxu0 0
    %431 = vmatpush1.bf16.msra.mxu0 %v418
    %432 = vmatprep.subr.bf16.mxu0 0
    %433 = vmatpush1.bf16.msra.mxu0 %v417
    %434 = vmatprep.subr.bf16.mxu0 0
    %435 = vmatpush1.bf16.msra.mxu0 %v416
    %436 = vmatprep.subr.bf16.mxu0 0
    %437 = vmatpush1.bf16.msra.mxu0 %v415
    %438 = vmatprep.subr.bf16.mxu0 0
    %439 = vmatpush1.bf16.msra.mxu0 %v414
    %440 = vmatprep.subr.bf16.mxu0 0
    %441 = vmatpush1.bf16.msra.mxu0 %v413
    %442 = vmatprep.subr.bf16.mxu0 0
    %443 = vmatpush1.bf16.msra.mxu0 %v412
    %444 = vmatprep.subr.bf16.mxu0 0
    %445 = vmatpush2.bf16.msra.mxu0 0
    %446 = vmatprep.subr.bf16.mxu0 0
    %447 = vmatpush2.bf16.msra.mxu0 0
    %448 = vmatprep.subr.bf16.mxu0 0
    %449 = vmatpush2.bf16.msra.mxu0 0
    %450 = vmatprep.subr.bf16.mxu0 0
    %451 = vmatpush2.bf16.msra.mxu0 0
    %452 = vmatprep.subr.bf16.mxu0 0
    %453 = vmatpush2.bf16.msra.mxu0 0
    %454 = vmatprep.subr.bf16.mxu0 0
    %455 = vmatpush2.bf16.msra.mxu0 0
    %456 = vmatprep.subr.bf16.mxu0 0
    %457 = vmatpush2.bf16.msra.mxu0 0
    %458 = vmatprep.subr.bf16.mxu0 0
    %459 = vmatpush2.bf16.msra.mxu0 0
    %460 = vmatprep.mubr.bf16.mxu0 0
    %461 = vmatmul.mubr.bf16.gmra.mxu0 %v356
    %v462 = vpop.f32.mrf.mxu0
    %v463 = vadd.f32 %v378, %v462
    %v464 = vpop.f32.mrf.mxu0
    %v465 = vpop.f32.mrf.mxu0
    %v466 = vadd.f32 %v378, %v465
    %v467 = vpop.f32.mrf.mxu0
    %468 = vdwg.mxu0
    %v469 = vpack.c.bf16 %v466, %v463
    %v471 = vunpack.c.l.b16 %v469
    %v472 = vunpack.c.h.b16 %v469
    %v473 = vpack.c.b16 %v471, %v471
    %v474 = vpack.c.b16 %v472, %v472
    %477 = vst [vmem:[#allocation12] sm:$0xf] %v473
    %478 = vst [vmem:[#allocation12 + $0x4] sm:$0xf] %v474
    // Predicated region
    $region60: #{tpu_custom_call.1} parent=1 // pred_check
      _
    $region61: #{tpu_custom_call.1} parent=1 // pred_check_branch
      %480 = sbr.rel (0) target = $region63
    $region62: #{tpu_custom_call.1} parent=1 // pred_region
      %s482 = ssub.s32 128, 128
      %483 = vsyncadd [#allocation8], %s482
      %s484 = sshll.u32 [#allocation12], 4
      %s485 = int_to_ptr.vmem [resolvable:$true] %s484
      %490 = dma.vmem_to_hbm [thread:$0]  %s485, 128, %s9, [#allocation8], 64, 64, 4
    $region63: #{tpu_custom_call.1} parent=1 // pred_fallthru
      _
    // Predicated region
    $region64: #{tpu_custom_call.1} parent=1 // pred_check
      _
    $region65: #{tpu_custom_call.1} parent=1 // pred_check_branch
      %492 = sbr.rel (0) target = $region67
    $region66: #{tpu_custom_call.1} parent=1 // pred_region
      %493 = dma.done [#allocation8], 128
    $region67: #{tpu_custom_call.1} parent=1 // pred_fallthru
      _
    %494 = vsyncpa [#allocation7], 1
    %495 = vsyncpa [#allocation10], 1
    %496 = vsyncpa [#allocation8], 1
  %497 = vsyncmov [#allocation3]
  %s498 = vpop.sfrf %497
  %p499 = scmp.eq.s32.totalorder %s498, 0
  %p500 = pneg %p499
  %502 = shalt.err (%p500)

</llo_original>
